<compile_context>
chip_gen: v6e
topology: v6e:2x2x1
jax: 0.10.0
libtpu: 0.0.40
codegen_flags: <defaults>
</compile_context>

<pallas_src>
from functools import partial

import jax
import jax.numpy as jnp
from jax.experimental import pallas as pl
from jax.experimental.pallas import tpu as pltpu


def _round_up(a, b):
    return -(-a // b) * b


def _conv_kernel(x_ref, w_ref, b_ref, o_ref, *, KH, TH, N, stride):
    """One output-row tile; all batches folded into the matmul M axis.

    x_ref: (1, N, RW, W*Cin)  bf16 halo window of input rows for this tile
    w_ref: (KH, W*Cin, NCp)   bf16 banded weights (KW taps + width reflect folded)
    b_ref: (1, NCp)           f32 lane-dense bias (padded to NCp)
    o_ref: (N, TH, NCp)       f32 lane-dense output tile
    """
    WC = x_ref.shape[-1]
    NCp = o_ref.shape[-1]
    M = N * TH

    def lhs(kh):
        if stride == 1:
            sl = x_ref[0, :, pl.ds(kh, TH), :]
        else:
            sl = x_ref[0, :, pl.ds(kh, TH, stride), :]
        # (N, TH, WC) -> (N*TH, WC): merges leading (sublane-side) dims only.
        return sl.reshape(M, WC)

    # kh = 0 initialises the accumulator (no zero materialisation); bias added
    # once per tile.  Remaining taps accumulate in f32 (MRB in-place on v7x).
    acc = jnp.dot(lhs(0), w_ref[0], preferred_element_type=jnp.float32)
    acc = acc + b_ref[...]
    for kh in range(1, KH):
        acc = acc + jnp.dot(lhs(kh), w_ref[kh], preferred_element_type=jnp.float32)

    o_ref[...] = acc.reshape(N, TH, NCp).astype(o_ref.dtype)


def _banded_weights(weight_oihw, Win, Wo, stride, pad):
    """Fold KW taps, Cin, and width reflection into a (KH, Win*Cin, Wo*Cout) matrix.

    big[kh, win*Cin + cin, wo*Cout + cout] =
        sum over kw with reflect(wo*stride + kw - pad) == win of w[kh, kw, cin, cout]
    """
    Cout, Cin, KH, KW = weight_oihw.shape
    w = jnp.transpose(weight_oihw, (2, 3, 1, 0))  # (KH, KW, Cin, Cout)

    # Source (unpadded) input column for each (output col, width tap), reflected.
    src = jnp.arange(Wo)[:, None] * stride + jnp.arange(KW)[None, :] - pad  # (Wo, KW)
    src = jnp.where(src < 0, -src, src)
    src = jnp.where(src >= Win, 2 * (Win - 1) - src, src)

    onehot = (src[:, :, None] == jnp.arange(Win)[None, None, :]).astype(w.dtype)
    # big[kh, win, cin, wo, cout] = sum_kw onehot[wo, kw, win] * w[kh, kw, cin, cout]
    big = jnp.einsum("oki,hkcd->hicod", onehot, w)
    return big.reshape(KH, Win * Cin, Wo * Cout)


def conv_layer_forward(x_nchw, weight_oihw, bias, stride):
    """Equivalent of ConvLayer.forward: ReflectionPad2d(k//2) -> Conv2d(stride)."""
    Cout, Cin, KH, KW = weight_oihw.shape
    assert KH == KW, "ConvLayer uses a single int kernel_size (square kernel)"
    pad = KH // 2

    N, Cin_x, H, W = x_nchw.shape
    assert Cin_x == Cin
    assert pad < H and pad < W, "reflection padding requires pad < spatial dims"

    Hp = H + 2 * pad
    Ho = (Hp - KH) // stride + 1
    Wo = (W + 2 * pad - KW) // stride + 1
    WC = W * Cin                      # lane axis of the input rows
    NC = Wo * Cout                    # true output lane width
    NCp = _round_up(NC, 128)          # padded so every store is a full-lane vst

    # Output-row tile height: fill the MXU M axis (target N*TH ~= 256),
    # multiple of 8, capped at the (rounded-up) image height.
    TH = max(8, min(_round_up(Ho, 8), _round_up(max(256 // max(N, 1), 1), 8)))
    T = -(-Ho // TH)
    Ho_pad = T * TH

    # --- XLA glue: layout + HEIGHT reflection pad (width reflect is in-weights).
    x_nhwc = jnp.transpose(x_nchw, (0, 2, 3, 1))                       # (N, H, W, Cin)
    x_nhwc = jnp.pad(x_nhwc, ((0, 0), (pad, pad), (0, 0), (0, 0)), mode="reflect")
    x_flat = x_nhwc.reshape(N, Hp, WC).astype(jnp.bfloat16)            # (N, Hp, W*Cin)

    rows_needed = (Ho_pad - 1) * stride + KH
    if rows_needed > Hp:
        # Extra rows only feed discarded (padded) output rows.
        x_flat = jnp.pad(x_flat, ((0, 0), (0, rows_needed - Hp), (0, 0)))

    RW = (TH - 1) * stride + KH
    # Halo-tiled per-row-tile windows: each grid step DMAs only its own rows.
    x_win = jnp.stack(
        [x_flat[:, r * TH * stride: r * TH * stride + RW, :] for r in range(T)],
        axis=0)                                                        # (T, N, RW, WC)

    w_big = _banded_weights(weight_oihw, W, Wo, stride, pad)           # (KH, WC, NC)
    b_big = jnp.tile(bias, Wo).reshape(1, NC).astype(jnp.float32)      # lane-dense bias
    if NCp > NC:
        w_big = jnp.pad(w_big, ((0, 0), (0, 0), (0, NCp - NC)))
        b_big = jnp.pad(b_big, ((0, 0), (0, NCp - NC)))
    w_big = w_big.astype(jnp.bfloat16)

    kernel = partial(_conv_kernel, KH=KH, TH=TH, N=N, stride=stride)

    flops = 2 * KH * (N * Ho_pad) * WC * NCp
    bytes_accessed = (x_win.size * 2 + w_big.size * 2 + b_big.size * 4
                      + N * Ho_pad * NCp * 4)

    out_flat = pl.pallas_call(
        kernel,
        out_shape=jax.ShapeDtypeStruct((N, Ho_pad, NCp), x_nchw.dtype),
        grid=(T,),
        in_specs=[
            pl.BlockSpec((1, N, RW, WC), lambda r: (r, 0, 0, 0)),  # halo window
            pl.BlockSpec((KH, WC, NCp), lambda r: (0, 0, 0)),      # weights resident
            pl.BlockSpec((1, NCp), lambda r: (0, 0)),              # bias resident
        ],
        out_specs=pl.BlockSpec((N, TH, NCp), lambda r: (0, r, 0)),  # lane-dense
        compiler_params=pltpu.CompilerParams(
            dimension_semantics=("parallel",)),
        cost_estimate=pl.CostEstimate(
            flops=int(flops), transcendentals=0,
            bytes_accessed=int(bytes_accessed)),
    )(x_win, w_big, b_big)

    # (N, Ho_pad, NCp) -> strip padding -> NCHW to match the PyTorch convention.
    out = out_flat[:, :Ho, :NC].reshape(N, Ho, Wo, Cout)
    return jnp.transpose(out, (0, 3, 1, 2))


if __name__ == "__main__":
    # ConvLayer(in_channels=4, out_channels=8, kernel_size=3, stride=1)
    N, Cin, H, W = 2, 4, 16, 16
    Cout, K, stride = 8, 3, 1

    key = jax.random.PRNGKey(0)
    kx, kw, kb = jax.random.split(key, 3)

    x = jax.random.normal(kx, (N, Cin, H, W), dtype=jnp.float32)
    fan_in = Cin * K * K
    bound = 1.0 / (fan_in ** 0.5)
    weight = jax.random.uniform(
        kw, (Cout, Cin, K, K), minval=-bound, maxval=bound, dtype=jnp.float32
    )
    bias = jax.random.uniform(
        kb, (Cout,), minval=-bound, maxval=bound, dtype=jnp.float32
    )

    out = conv_layer_forward(x, weight, bias, stride)
    out = jax.block_until_ready(out)

    # Cross-check against XLA's f32 conv (full reflection pad + VALID conv + bias).
    pad = K // 2
    x_pad = jnp.pad(x, ((0, 0), (0, 0), (pad, pad), (pad, pad)), mode="reflect")
    ref = jax.lax.conv_general_dilated(
        x_pad, weight, (stride, stride), "VALID",
        dimension_numbers=("NCHW", "OIHW", "NCHW"),
    ) + bias[None, :, None, None]
    ref = jax.block_until_ready(ref)

    assert out.shape == ref.shape, (out.shape, ref.shape)
    # bf16 operands / f32 accumulation vs the f32 reference -> relaxed tolerance.
    assert jnp.allclose(out, ref, atol=5e-2, rtol=5e-2), float(
        jnp.max(jnp.abs(out - ref))
    )
    print("KERNEL_OK")
</pallas_src>

<mosaic_0001>
module attributes {stable_mosaic.version = 11 : i64} {
  func.func @_conv_kernel(%arg0: i32, %arg1: memref<1x2x18x64xbf16, #tpu.memory_space<vmem>>, %arg2: memref<3x64x128xbf16, #tpu.memory_space<vmem>>, %arg3: memref<1x128xf32, #tpu.memory_space<vmem>>, %arg4: memref<2x16x128xf32, #tpu.memory_space<vmem>>) attributes {dimension_semantics = [#tpu.dimension_semantics<parallel>], iteration_bounds = array<i64: 1>, scalar_prefetch = 0 : i64, scratch_operands = 0 : i64, tpu.core_type = #tpu.core_type<tc>, window_params = [{transform_indices = @transform_0, window_bounds = array<i64: 1, 2, 18, 64>}, {pipeline_mode = #tpu.pipeline_mode<synchronous>, transform_indices = @transform_1, window_bounds = array<i64: 3, 64, 128>}, {pipeline_mode = #tpu.pipeline_mode<synchronous>, transform_indices = @transform_2, window_bounds = array<i64: 1, 128>}, {transform_indices = @transform_3, window_bounds = array<i64: 2, 16, 128>}]} {
    %c0 = arith.constant 0 : index
    %c0_0 = arith.constant 0 : index
    %c0_1 = arith.constant 0 : index
    %c0_2 = arith.constant 0 : index
    %0 = vector.load %arg1[%c0, %c0_0, %c0_1, %c0_2] : memref<1x2x18x64xbf16, #tpu.memory_space<vmem>>, vector<1x2x16x64xbf16>
    %1 = vector.shape_cast %0 : vector<1x2x16x64xbf16> to vector<2x16x64xbf16>
    %2 = vector.shape_cast %1 : vector<2x16x64xbf16> to vector<32x64xbf16>
    %c0_3 = arith.constant 0 : index
    %c0_4 = arith.constant 0 : index
    %c0_5 = arith.constant 0 : index
    %3 = vector.load %arg2[%c0_3, %c0_4, %c0_5] : memref<3x64x128xbf16, #tpu.memory_space<vmem>>, vector<1x64x128xbf16>
    %4 = vector.shape_cast %3 : vector<1x64x128xbf16> to vector<64x128xbf16>
    %cst = arith.constant dense<0.000000e+00> : vector<32x128xf32>
    %5 = tpu.matmul %2, %4, %cst {dimension_numbers = #tpu.dot_dimension_numbers<[1], [0], [0], [1], [0, 0, 1, 1], [], []>} : vector<32x64xbf16>, vector<64x128xbf16>, vector<32x128xf32> -> vector<32x128xf32>
    %c0_6 = arith.constant 0 : index
    %c0_7 = arith.constant 0 : index
    %6 = vector.load %arg3[%c0_6, %c0_7] : memref<1x128xf32, #tpu.memory_space<vmem>>, vector<1x128xf32>
    %7 = vector.broadcast %6 : vector<1x128xf32> to vector<32x128xf32>
    %8 = arith.addf %5, %7 : vector<32x128xf32>
    %c0_8 = arith.constant 0 : index
    %c0_9 = arith.constant 0 : index
    %c1 = arith.constant 1 : index
    %c0_10 = arith.constant 0 : index
    %9 = vector.load %arg1[%c0_8, %c0_9, %c1, %c0_10] : memref<1x2x18x64xbf16, #tpu.memory_space<vmem>>, vector<1x2x16x64xbf16>
    %10 = vector.shape_cast %9 : vector<1x2x16x64xbf16> to vector<2x16x64xbf16>
    %11 = vector.shape_cast %10 : vector<2x16x64xbf16> to vector<32x64xbf16>
    %c1_11 = arith.constant 1 : index
    %c0_12 = arith.constant 0 : index
    %c0_13 = arith.constant 0 : index
    %12 = vector.load %arg2[%c1_11, %c0_12, %c0_13] : memref<3x64x128xbf16, #tpu.memory_space<vmem>>, vector<1x64x128xbf16>
    %13 = vector.shape_cast %12 : vector<1x64x128xbf16> to vector<64x128xbf16>
    %cst_14 = arith.constant dense<0.000000e+00> : vector<32x128xf32>
    %14 = tpu.matmul %11, %13, %cst_14 {dimension_numbers = #tpu.dot_dimension_numbers<[1], [0], [0], [1], [0, 0, 1, 1], [], []>} : vector<32x64xbf16>, vector<64x128xbf16>, vector<32x128xf32> -> vector<32x128xf32>
    %15 = arith.addf %8, %14 : vector<32x128xf32>
    %c0_15 = arith.constant 0 : index
    %c0_16 = arith.constant 0 : index
    %c2 = arith.constant 2 : index
    %c0_17 = arith.constant 0 : index
    %16 = vector.load %arg1[%c0_15, %c0_16, %c2, %c0_17] : memref<1x2x18x64xbf16, #tpu.memory_space<vmem>>, vector<1x2x16x64xbf16>
    %17 = vector.shape_cast %16 : vector<1x2x16x64xbf16> to vector<2x16x64xbf16>
    %18 = vector.shape_cast %17 : vector<2x16x64xbf16> to vector<32x64xbf16>
    %c2_18 = arith.constant 2 : index
    %c0_19 = arith.constant 0 : index
    %c0_20 = arith.constant 0 : index
    %19 = vector.load %arg2[%c2_18, %c0_19, %c0_20] : memref<3x64x128xbf16, #tpu.memory_space<vmem>>, vector<1x64x128xbf16>
    %20 = vector.shape_cast %19 : vector<1x64x128xbf16> to vector<64x128xbf16>
    %cst_21 = arith.constant dense<0.000000e+00> : vector<32x128xf32>
    %21 = tpu.matmul %18, %20, %cst_21 {dimension_numbers = #tpu.dot_dimension_numbers<[1], [0], [0], [1], [0, 0, 1, 1], [], []>} : vector<32x64xbf16>, vector<64x128xbf16>, vector<32x128xf32> -> vector<32x128xf32>
    %22 = arith.addf %15, %21 : vector<32x128xf32>
    %23 = vector.shape_cast %22 : vector<32x128xf32> to vector<2x16x128xf32>
    %c0_22 = arith.constant 0 : index
    %c0_23 = arith.constant 0 : index
    %c0_24 = arith.constant 0 : index
    %24 = vector.load %arg4[%c0_22, %c0_23, %c0_24] : memref<2x16x128xf32, #tpu.memory_space<vmem>>, vector<2x16x128xf32>
    tpu.vector_store %arg4[%c0_22, %c0_23, %c0_24], %23 {strides = array<i32>} : memref<2x16x128xf32, #tpu.memory_space<vmem>>, vector<2x16x128xf32>,
    return
  }
  func.func @transform_0(%arg0: i32) -> (i32, i32, i32, i32) {
    %c0_i32 = arith.constant 0 : i32
    %c0_i32_0 = arith.constant 0 : i32
    %c0_i32_1 = arith.constant 0 : i32
    %c0_i32_2 = arith.constant 0 : i32
    return %arg0, %c0_i32, %c0_i32_0, %c0_i32_1 : i32, i32, i32, i32
  }
  func.func @transform_1(%arg0: i32) -> (i32, i32, i32) {
    %c0_i32 = arith.constant 0 : i32
    %c0_i32_0 = arith.constant 0 : i32
    %c0_i32_1 = arith.constant 0 : i32
    %c0_i32_2 = arith.constant 0 : i32
    return %c0_i32, %c0_i32_0, %c0_i32_1 : i32, i32, i32
  }
  func.func @transform_2(%arg0: i32) -> (i32, i32) {
    %c0_i32 = arith.constant 0 : i32
    %c0_i32_0 = arith.constant 0 : i32
    %c0_i32_1 = arith.constant 0 : i32
    return %c0_i32, %c0_i32_0 : i32, i32
  }
  func.func @transform_3(%arg0: i32) -> (i32, i32, i32) {
    %c0_i32 = arith.constant 0 : i32
    %c0_i32_0 = arith.constant 0 : i32
    %c0_i32_1 = arith.constant 0 : i32
    return %c0_i32, %arg0, %c0_i32_0 : i32, i32, i32
  }
}

</mosaic_0001>

<llo_original>
// kernel: tpu_custom_call.1
$region0: #{tpu_custom_call.1}
  #allocation0 [shape = 'u32[]', space=smem, size = 0x4, offset = 0x4, fixed_abs, tag = 'smem constant byte address 0x4 - core index']
  #allocation1 [shape = 'u32[144,128]{1,0:T(1,128)}', space=vmem, size = 0x12000, scoped, tag = 'internal scratch']
  %s0 = inlined_call_operand.vmem [shape: bf16[1,2,18,64], index: 0, kind: input, shape index: {}]
  %s1 = inlined_call_operand.hbm [shape: bf16[3,64,128], index: 1, kind: input, shape index: {}]
  %s2 = inlined_call_operand.vmem [shape: f32[1,128], index: 2, kind: input, shape index: {}]
  %s3 = inlined_call_operand.hbm [shape: f32[2,16,128], index: 3, kind: output, shape index: {}]
  %s4 = sld [smem:[#allocation0]]
  $region26: #{tpu_custom_call.1} parent=0
    _
  %s6 = ssub.s32 1, %s4
  %s7 = scalar_select 0, %s6, %s4
  $region1: #{tpu_custom_call.1} parent=0
    #allocation2 [shape = 'u8[49152]{0}', space=vmem, size = 0xc000, scoped, tag = 'input window, operand 1, single buffered']
    #allocation3 [shape = 's32[1]{0}', space=sflag, size = 0x4, scoped, tag = 'scoped memory for tpu_custom_call.1']
    #allocation4 [shape = 's32[1]{0}', space=sflag, size = 0x4, scoped, tag = 'scoped memory for tpu_custom_call.1']
    #allocation5 [shape = 'u8[16384]{0}', space=vmem, size = 0x4000, scoped, tag = 'output window, operand 0, single buffered']
    %8 = vsyncpa [#allocation3], 0
    %9 = vsyncpa [#allocation4], 0
    // Predicated region
    $region2: #{tpu_custom_call.1} parent=1 // pred_check
      _
    $region3: #{tpu_custom_call.1} parent=1 // pred_check_branch
      %11 = sbr.rel (0) target = $region5
    $region4: #{tpu_custom_call.1} parent=1 // pred_region
      _
    $region5: #{tpu_custom_call.1} parent=1 // pred_fallthru
      _
    // Predicated region
    $region6: #{tpu_custom_call.1} parent=1 // pred_check
      _
    $region7: #{tpu_custom_call.1} parent=1 // pred_check_branch
      %13 = sbr.rel (0) target = $region9
    $region8: #{tpu_custom_call.1} parent=1 // pred_region
      %s15 = ssub.s32 1536, 1536
      %16 = vsyncadd [#allocation3], %s15
      %s17 = sshll.u32 [#allocation2], 4
      %s18 = int_to_ptr.vmem [resolvable:$true] %s17
      %23 = dma.hbm_to_vmem [thread:$0]  %s1, 1536, %s18, [#allocation3], 64, 64, 4
    $region9: #{tpu_custom_call.1} parent=1 // pred_fallthru
      _
    // Predicated region
    $region10: #{tpu_custom_call.1} parent=1 // pred_check
      _
    $region11: #{tpu_custom_call.1} parent=1 // pred_check_branch
      %25 = sbr.rel (0) target = $region13
    $region12: #{tpu_custom_call.1} parent=1 // pred_region
      _
    $region13: #{tpu_custom_call.1} parent=1 // pred_fallthru
      _
    // Predicated region
    $region14: #{tpu_custom_call.1} parent=1 // pred_check
      _
    $region15: #{tpu_custom_call.1} parent=1 // pred_check_branch
      %27 = sbr.rel (0) target = $region17
    $region16: #{tpu_custom_call.1} parent=1 // pred_region
      %28 = dma.done [#allocation3], 1536
    $region17: #{tpu_custom_call.1} parent=1 // pred_fallthru
      _
    %v30 = vld [vmem:[%s0] sm:$0xf]
    %v31 = vld [vmem:[%s0 + $0x4] sm:$0xf]
    %v32 = vld [vmem:[%s0 + $0xc] sm:$0xf]
    %v33 = vld [vmem:[%s0 + $0x10] sm:$0xf]
    %v34 = vld [vmem:[#allocation2] sm:$0xf]
    %v35 = vld [vmem:[#allocation2 + $0x4] sm:$0xf]
    %v36 = vld [vmem:[#allocation2 + $0x8] sm:$0xf]
    %v37 = vld [vmem:[#allocation2 + $0xc] sm:$0xf]
    %v38 = vld [vmem:[#allocation2 + $0x10] sm:$0xf]
    %v39 = vld [vmem:[#allocation2 + $0x14] sm:$0xf]
    %v40 = vld [vmem:[#allocation2 + $0x18] sm:$0xf]
    %v41 = vld [vmem:[#allocation2 + $0x1c] sm:$0xf]
    %v42 = vld [vmem:[%s2] sm:$0x1]
    %v44 = vlaneseq
    %v45 = vshrl.u32 %v44, 7
    %v46 = vsub.s32 0, %v45
    %v47 = vrot.slane %v42, %v46
    %v53 = vunpack.c.l.b16 %v30
    %v54 = vunpack.c.l.b16 %v31
    %v55 = vunpack.c.l.b16 %v32
    %v56 = vunpack.c.l.b16 %v33
    %v57 = vpack.c.b16 %v54, %v53
    %v58 = vpack.c.b16 %v56, %v55
    %v67 = vunpack.c.l.b16 %v34
    %v68 = vunpack.c.l.b16 %v35
    %v69 = vunpack.c.l.b16 %v36
    %v70 = vunpack.c.l.b16 %v37
    %v71 = vunpack.c.l.b16 %v38
    %v72 = vunpack.c.l.b16 %v39
    %v73 = vunpack.c.l.b16 %v40
    %v74 = vunpack.c.l.b16 %v41
    %v75 = vpack.c.b16 %v68, %v67
    %v76 = vpack.c.b16 %v70, %v69
    %v77 = vpack.c.b16 %v72, %v71
    %v78 = vpack.c.b16 %v74, %v73
    %vm83 = vcmask 523264
    %v85 = vsel %vm83, %v57, 0
    %v88 = vsel %vm83, %v58, 0
    %90 = vmatprep.subr.bf16.mxu0 0
    %91 = vmatpush1.bf16.msra.mxu0 0
    %92 = vmatprep.subr.bf16.mxu0 0
    %93 = vmatpush1.bf16.msra.mxu0 0
    %94 = vmatprep.subr.bf16.mxu0 0
    %95 = vmatpush1.bf16.msra.mxu0 0
    %96 = vmatprep.subr.bf16.mxu0 0
    %97 = vmatpush1.bf16.msra.mxu0 0
    %98 = vmatprep.subr.bf16.mxu0 0
    %99 = vmatpush1.bf16.msra.mxu0 %v78
    %100 = vmatprep.subr.bf16.mxu0 0
    %101 = vmatpush1.bf16.msra.mxu0 %v77
    %102 = vmatprep.subr.bf16.mxu0 0
    %103 = vmatpush1.bf16.msra.mxu0 %v76
    %104 = vmatprep.subr.bf16.mxu0 0
    %105 = vmatpush1.bf16.msra.mxu0 %v75
    %106 = vmatprep.subr.bf16.mxu0 0
    %107 = vmatpush2.bf16.msra.mxu0 0
    %108 = vmatprep.subr.bf16.mxu0 0
    %109 = vmatpush2.bf16.msra.mxu0 0
    %110 = vmatprep.subr.bf16.mxu0 0
    %111 = vmatpush2.bf16.msra.mxu0 0
    %112 = vmatprep.subr.bf16.mxu0 0
    %113 = vmatpush2.bf16.msra.mxu0 0
    %114 = vmatprep.subr.bf16.mxu0 0
    %115 = vmatpush2.bf16.msra.mxu0 0
    %116 = vmatprep.subr.bf16.mxu0 0
    %117 = vmatpush2.bf16.msra.mxu0 0
    %118 = vmatprep.subr.bf16.mxu0 0
    %119 = vmatpush2.bf16.msra.mxu0 0
    %120 = vmatprep.subr.bf16.mxu0 0
    %121 = vmatpush2.bf16.msra.mxu0 0
    %122 = vmatprep.mubr.bf16.mxu0 0
    %123 = vmatmul.mubr.bf16.gmra.mxu0 %v85
    %v124 = vpop.f32.mrf.mxu0
    %v125 = vadd.f32 %v47, %v124
    %v126 = vpop.f32.mrf.mxu0
    %v127 = vpop.f32.mrf.mxu0
    %v128 = vadd.f32 %v47, %v127
    %v129 = vpop.f32.mrf.mxu0
    %130 = vmatprep.mubr.bf16.mxu0 0
    %131 = vmatmul.mubr.bf16.gmra.mxu0 %v88
    %v132 = vpop.f32.mrf.mxu0
    %v133 = vadd.f32 %v47, %v132
    %v134 = vpop.f32.mrf.mxu0
    %v135 = vpop.f32.mrf.mxu0
    %v136 = vadd.f32 %v47, %v135
    %v137 = vpop.f32.mrf.mxu0
    %138 = vdwg.mxu0
    %v139 = vld [vmem:[%s0] sm:$0xf]
    %v140 = vld [vmem:[%s0 + $0x4] sm:$0xf]
    %v141 = vld [vmem:[%s0 + $0x8] sm:$0x1]
    %v142 = vld [vmem:[%s0 + $0xc] sm:$0xf]
    %v143 = vld [vmem:[%s0 + $0x10] sm:$0xf]
    %v144 = vld [vmem:[%s0 + $0x14] sm:$0x1]
    %vm145 = vsmask.f32 3328
    %vm146 = vsmask.f32 7440
    %vm147 = vmor %vm145, %vm146
    %v149 = vshrl.u32 %v139, 16
    %v151 = vrot.slane %v149, 4
    %v152 = vshll.u32 %v139, 16
    %v154 = vrot.slane %v152, 5
    %v155 = vor.u32 %v151, %v154
    %v156 = vrot.slane %v155, 4
    %v158 = vshll.u32 %v140, 16
    %v160 = vrot.slane %v158, 5
    %v161 = vsel %vm147, %v156, %v160
    %v162 = vshrl.u32 %v140, 16
    %v164 = vrot.slane %v162, 4
    %v165 = vor.u32 %v164, %v160
    %v166 = vrot.slane %v165, 4
    %v168 = vshll.u32 %v141, 16
    %v170 = vrot.slane %v168, 5
    %v171 = vsel %vm147, %v166, %v170
    %v173 = vshrl.u32 %v142, 16
    %v175 = vrot.slane %v173, 4
    %v176 = vshll.u32 %v142, 16
    %v178 = vrot.slane %v176, 5
    %v179 = vor.u32 %v175, %v178
    %v180 = vrot.slane %v179, 4
    %v182 = vshll.u32 %v143, 16
    %v184 = vrot.slane %v182, 5
    %v185 = vsel %vm147, %v180, %v184
    %v186 = vshrl.u32 %v143, 16
    %v188 = vrot.slane %v186, 4
    %v189 = vor.u32 %v188, %v184
    %v190 = vrot.slane %v189, 4
    %v192 = vshll.u32 %v144, 16
    %v194 = vrot.slane %v192, 5
    %v195 = vsel %vm147, %v190, %v194
    %s196 = scalar_lea.vmem [#allocation2], 32
    %v197 = vld [vmem:[%s196] sm:$0xf]
    %v198 = vld [vmem:[%s196 + $0x4] sm:$0xf]
    %v199 = vld [vmem:[%s196 + $0x8] sm:$0xf]
    %v200 = vld [vmem:[%s196 + $0xc] sm:$0xf]
    %v201 = vld [vmem:[%s196 + $0x10] sm:$0xf]
    %v202 = vld [vmem:[%s196 + $0x14] sm:$0xf]
    %v203 = vld [vmem:[%s196 + $0x18] sm:$0xf]
    %v204 = vld [vmem:[%s196 + $0x1c] sm:$0xf]
    %v205 = vunpack.c.l.b16 %v161
    %v206 = vunpack.c.l.b16 %v171
    %v207 = vunpack.c.l.b16 %v185
    %v208 = vunpack.c.l.b16 %v195
    %v209 = vpack.c.b16 %v206, %v205
    %v210 = vpack.c.b16 %v208, %v207
    %v219 = vunpack.c.l.b16 %v197
    %v220 = vunpack.c.l.b16 %v198
    %v221 = vunpack.c.l.b16 %v199
    %v222 = vunpack.c.l.b16 %v200
    %v223 = vunpack.c.l.b16 %v201
    %v224 = vunpack.c.l.b16 %v202
    %v225 = vunpack.c.l.b16 %v203
    %v226 = vunpack.c.l.b16 %v204
    %v227 = vpack.c.b16 %v220, %v219
    %v228 = vpack.c.b16 %v222, %v221
    %v229 = vpack.c.b16 %v224, %v223
    %v230 = vpack.c.b16 %v226, %v225
    %v236 = vsel %vm83, %v209, 0
    %v239 = vsel %vm83, %v210, 0
    %241 = vmatprep.subr.bf16.mxu0 0
    %242 = vmatpush1.bf16.msra.mxu0 0
    %243 = vmatprep.subr.bf16.mxu0 0
    %244 = vmatpush1.bf16.msra.mxu0 0
    %245 = vmatprep.subr.bf16.mxu0 0
    %246 = vmatpush1.bf16.msra.mxu0 0
    %247 = vmatprep.subr.bf16.mxu0 0
    %248 = vmatpush1.bf16.msra.mxu0 0
    %249 = vmatprep.subr.bf16.mxu0 0
    %250 = vmatpush1.bf16.msra.mxu0 %v230
    %251 = vmatprep.subr.bf16.mxu0 0
    %252 = vmatpush1.bf16.msra.mxu0 %v229
    %253 = vmatprep.subr.bf16.mxu0 0
    %254 = vmatpush1.bf16.msra.mxu0 %v228
    %255 = vmatprep.subr.bf16.mxu0 0
    %256 = vmatpush1.bf16.msra.mxu0 %v227
    %257 = vmatprep.subr.bf16.mxu0 0
    %258 = vmatpush2.bf16.msra.mxu0 0
    %259 = vmatprep.subr.bf16.mxu0 0
    %260 = vmatpush2.bf16.msra.mxu0 0
    %261 = vmatprep.subr.bf16.mxu0 0
    %262 = vmatpush2.bf16.msra.mxu0 0
    %263 = vmatprep.subr.bf16.mxu0 0
    %264 = vmatpush2.bf16.msra.mxu0 0
    %265 = vmatprep.subr.bf16.mxu0 0
    %266 = vmatpush2.bf16.msra.mxu0 0
    %267 = vmatprep.subr.bf16.mxu0 0
    %268 = vmatpush2.bf16.msra.mxu0 0
    %269 = vmatprep.subr.bf16.mxu0 0
    %270 = vmatpush2.bf16.msra.mxu0 0
    %271 = vmatprep.subr.bf16.mxu0 0
    %272 = vmatpush2.bf16.msra.mxu0 0
    %273 = vmatprep.mubr.bf16.mxu0 0
    %274 = vmatmul.mubr.bf16.gmra.mxu0 %v236
    %v275 = vpop.f32.mrf.mxu0
    %v276 = vadd.f32 0.0, %v275
    %v277 = vpop.f32.mrf.mxu0
    %v278 = vpop.f32.mrf.mxu0
    %v279 = vadd.f32 0.0, %v278
    %v280 = vpop.f32.mrf.mxu0
    %281 = vmatprep.mubr.bf16.mxu0 0
    %282 = vmatmul.mubr.bf16.gmra.mxu0 %v239
    %v283 = vpop.f32.mrf.mxu0
    %v284 = vadd.f32 0.0, %v283
    %v285 = vpop.f32.mrf.mxu0
    %v286 = vpop.f32.mrf.mxu0
    %v287 = vadd.f32 0.0, %v286
    %v288 = vpop.f32.mrf.mxu0
    %289 = vdwg.mxu0
    %v290 = vadd.f32 %v125, %v276
    %v291 = vadd.f32 %v128, %v279
    %v292 = vadd.f32 %v133, %v284
    %v293 = vadd.f32 %v136, %v287
    %v294 = vld [vmem:[%s0] sm:$0xe]
    %v295 = vld [vmem:[%s0 + $0xc] sm:$0xe]
    %vm302 = vcmask 1042432
    %vm303 = vcmask 1046532
    %vm304 = vmor %vm302, %vm303
    %v305 = vrot.slane %v294, 5
    %v306 = vrot.slane %v305, 4
    %v307 = vrot.slane %v140, 5
    %v308 = vsel %vm304, %v306, %v307
    %v309 = vrot.slane %v307, 4
    %v310 = vrot.slane %v141, 5
    %v311 = vsel %vm304, %v309, %v310
    %v312 = vrot.slane %v295, 5
    %v313 = vrot.slane %v312, 4
    %v314 = vrot.slane %v143, 5
    %v315 = vsel %vm304, %v313, %v314
    %v316 = vrot.slane %v314, 4
    %v317 = vrot.slane %v144, 5
    %v318 = vsel %vm304, %v316, %v317
    %s319 = scalar_lea.vmem [#allocation2], 64
    %v320 = vld [vmem:[%s319] sm:$0xf]
    %v321 = vld [vmem:[%s319 + $0x4] sm:$0xf]
    %v322 = vld [vmem:[%s319 + $0x8] sm:$0xf]
    %v323 = vld [vmem:[%s319 + $0xc] sm:$0xf]
    %v324 = vld [vmem:[%s319 + $0x10] sm:$0xf]
    %v325 = vld [vmem:[%s319 + $0x14] sm:$0xf]
    %v326 = vld [vmem:[%s319 + $0x18] sm:$0xf]
    %v327 = vld [vmem:[%s319 + $0x1c] sm:$0xf]
    %v328 = vunpack.c.l.b16 %v308
    %v329 = vunpack.c.l.b16 %v311
    %v330 = vunpack.c.l.b16 %v315
    %v331 = vunpack.c.l.b16 %v318
    %v332 = vpack.c.b16 %v329, %v328
    %v333 = vpack.c.b16 %v331, %v330
    %v342 = vunpack.c.l.b16 %v320
    %v343 = vunpack.c.l.b16 %v321
    %v344 = vunpack.c.l.b16 %v322
    %v345 = vunpack.c.l.b16 %v323
    %v346 = vunpack.c.l.b16 %v324
    %v347 = vunpack.c.l.b16 %v325
    %v348 = vunpack.c.l.b16 %v326
    %v349 = vunpack.c.l.b16 %v327
    %v350 = vpack.c.b16 %v343, %v342
    %v351 = vpack.c.b16 %v345, %v344
    %v352 = vpack.c.b16 %v347, %v346
    %v353 = vpack.c.b16 %v349, %v348
    %v359 = vsel %vm83, %v332, 0
    %v362 = vsel %vm83, %v333, 0
    %364 = vmatprep.subr.bf16.mxu0 0
    %365 = vmatpush1.bf16.msra.mxu0 0
    %366 = vmatprep.subr.bf16.mxu0 0
    %367 = vmatpush1.bf16.msra.mxu0 0
    %368 = vmatprep.subr.bf16.mxu0 0
    %369 = vmatpush1.bf16.msra.mxu0 0
    %370 = vmatprep.subr.bf16.mxu0 0
    %371 = vmatpush1.bf16.msra.mxu0 0
    %372 = vmatprep.subr.bf16.mxu0 0
    %373 = vmatpush1.bf16.msra.mxu0 %v353
    %374 = vmatprep.subr.bf16.mxu0 0
    %375 = vmatpush1.bf16.msra.mxu0 %v352
    %376 = vmatprep.subr.bf16.mxu0 0
    %377 = vmatpush1.bf16.msra.mxu0 %v351
    %378 = vmatprep.subr.bf16.mxu0 0
    %379 = vmatpush1.bf16.msra.mxu0 %v350
    %380 = vmatprep.subr.bf16.mxu0 0
    %381 = vmatpush2.bf16.msra.mxu0 0
    %382 = vmatprep.subr.bf16.mxu0 0
    %383 = vmatpush2.bf16.msra.mxu0 0
    %384 = vmatprep.subr.bf16.mxu0 0
    %385 = vmatpush2.bf16.msra.mxu0 0
    %386 = vmatprep.subr.bf16.mxu0 0
    %387 = vmatpush2.bf16.msra.mxu0 0
    %388 = vmatprep.subr.bf16.mxu0 0
    %389 = vmatpush2.bf16.msra.mxu0 0
    %390 = vmatprep.subr.bf16.mxu0 0
    %391 = vmatpush2.bf16.msra.mxu0 0
    %392 = vmatprep.subr.bf16.mxu0 0
    %393 = vmatpush2.bf16.msra.mxu0 0
    %394 = vmatprep.subr.bf16.mxu0 0
    %395 = vmatpush2.bf16.msra.mxu0 0
    %396 = vmatprep.mubr.bf16.mxu0 0
    %397 = vmatmul.mubr.bf16.gmra.mxu0 %v359
    %v398 = vpop.f32.mrf.mxu0
    %v399 = vadd.f32 0.0, %v398
    %v400 = vpop.f32.mrf.mxu0
    %v401 = vpop.f32.mrf.mxu0
    %v402 = vadd.f32 0.0, %v401
    %v403 = vpop.f32.mrf.mxu0
    %404 = vmatprep.mubr.bf16.mxu0 0
    %405 = vmatmul.mubr.bf16.gmra.mxu0 %v362
    %v406 = vpop.f32.mrf.mxu0
    %v407 = vadd.f32 0.0, %v406
    %v408 = vpop.f32.mrf.mxu0
    %v409 = vpop.f32.mrf.mxu0
    %v410 = vadd.f32 0.0, %v409
    %v411 = vpop.f32.mrf.mxu0
    %412 = vdwg.mxu0
    %v413 = vadd.f32 %v290, %v399
    %v414 = vadd.f32 %v291, %v402
    %v415 = vadd.f32 %v292, %v407
    %v416 = vadd.f32 %v293, %v410
    %417 = vst [vmem:[#allocation5] sm:$0xff] %v413
    %418 = vst [vmem:[#allocation5 + $0x8] sm:$0xff] %v414
    %419 = vst [vmem:[#allocation5 + $0x10] sm:$0xff] %v415
    %420 = vst [vmem:[#allocation5 + $0x18] sm:$0xff] %v416
    // Predicated region
    $region18: #{tpu_custom_call.1} parent=1 // pred_check
      _
    $region19: #{tpu_custom_call.1} parent=1 // pred_check_branch
      %422 = sbr.rel (0) target = $region21
    $region20: #{tpu_custom_call.1} parent=1 // pred_region
      %s424 = ssub.s32 512, 512
      %425 = vsyncadd [#allocation4], %s424
      %s426 = sshll.u32 [#allocation5], 4
      %s427 = int_to_ptr.vmem [resolvable:$true] %s426
      %432 = dma.vmem_to_hbm [thread:$0]  %s427, 512, %s3, [#allocation4], 128, 128, 8
    $region21: #{tpu_custom_call.1} parent=1 // pred_fallthru
      _
    // Predicated region
    $region22: #{tpu_custom_call.1} parent=1 // pred_check
      _
    $region23: #{tpu_custom_call.1} parent=1 // pred_check_branch
      %434 = sbr.rel (0) target = $region25
    $region24: #{tpu_custom_call.1} parent=1 // pred_region
      %435 = dma.done [#allocation4], 512
    $region25: #{tpu_custom_call.1} parent=1 // pred_fallthru
      _
    %436 = vsyncpa [#allocation3], 1
    %437 = vsyncpa [#allocation4], 1

</llo_original>
